<compile_context>
chip_gen: v6e
topology: v6e:2x2x1
jax: 0.10.0
libtpu: 0.0.40
codegen_flags: <defaults>
</compile_context>

<pallas_src>
import functools

import jax
import jax.numpy as jnp
from jax import lax
from jax.experimental import pallas as pl
from jax.experimental.pallas import tpu as pltpu


def make_gaussian_weight(channels: int, kernel_size: int, sigma: float) -> jnp.ndarray:
    """Deterministic weight construction, identical to the PyTorch __init__."""
    start = -kernel_size // 2 + 1          # Python floor-division, same as torch
    end = kernel_size // 2 + 1
    k = jnp.arange(start, end, dtype=jnp.float32)
    k = jnp.exp(-0.5 * (k / sigma) ** 2)
    k = k / jnp.sum(k)
    return jnp.tile(k[None, :], (channels, 1))   # (C, K); rows identical (as in PyTorch)


# ---------------------------------------------------------------------------
# In-kernel helpers
# ---------------------------------------------------------------------------

def _reflect_left(xc, pad):
    # F.pad(mode='reflect'): left pad column p (p = 0..pad-1) takes x[pad - p].
    return jnp.concatenate([xc[:, pad - p:pad - p + 1] for p in range(pad)], axis=-1)


def _reflect_right(xc, pad, tile_l):
    # F.pad(mode='reflect'): right pad column q (q = 0..pad-1) takes x[L - 2 - q].
    return jnp.concatenate(
        [xc[:, tile_l - 2 - q:tile_l - 1 - q] for q in range(pad)], axis=-1)


def _conv_chunk(xc, left, right, taps, tile_l, out_dtype):
    """Apply the K taps to one (r_chunk, tile_l) chunk (f32 accumulation)."""
    if left is not None:
        xwin = jnp.concatenate([left, xc, right], axis=-1)   # (r_chunk, tile_l + 2*pad)
    else:
        xwin = xc
    acc = taps[0] * xwin[:, 0:tile_l]
    for t in range(1, len(taps)):
        acc = acc + taps[t] * xwin[:, t:t + tile_l]
    return acc.astype(out_dtype)


# ---------------------------------------------------------------------------
# Kernels
# ---------------------------------------------------------------------------

def _smooth_kernel_single(w_ref, xc_ref, o_ref, *,
                          ksize, pad, tile_l, r_chunk, n_chunks):
    """Single L-tile variant: whole length in one block, reflect built in-kernel.
    No sliver inputs -> each input byte is read exactly once."""
    taps = [w_ref[t] for t in range(ksize)]          # hoisted SMEM scalar loads

    def chunk_body(c, carry):
        r0 = c * r_chunk if isinstance(c, int) else pl.multiple_of(c * r_chunk, r_chunk)
        rs = pl.ds(r0, r_chunk)
        xc = xc_ref[rs, :].astype(jnp.float32)
        if pad > 0:
            left = _reflect_left(xc, pad)
            right = _reflect_right(xc, pad, tile_l)
        else:
            left = right = None
        o_ref[rs, :] = _conv_chunk(xc, left, right, taps, tile_l, o_ref.dtype)
        return carry

    if n_chunks == 1:
        chunk_body(0, 0)
    else:
        lax.fori_loop(0, n_chunks, chunk_body, 0, unroll=True)


def _smooth_kernel_tiled(w_ref, xc_ref, xl_ref, xr_ref, o_ref, *,
                         ksize, pad, tile_l, n_l, r_chunk, n_chunks):
    """Multi L-tile variant: interior halos from 128-lane neighbour slivers,
    reflect built only on the two boundary tiles (gated by lax.cond)."""
    j = pl.program_id(1)
    is_first = j == 0
    is_last = j == n_l - 1
    sliver_w = xl_ref.shape[-1]
    taps = [w_ref[t] for t in range(ksize)]          # hoisted SMEM scalar loads

    def chunk_body(c, carry):
        r0 = c * r_chunk if isinstance(c, int) else pl.multiple_of(c * r_chunk, r_chunk)
        rs = pl.ds(r0, r_chunk)
        xc = xc_ref[rs, :].astype(jnp.float32)
        if pad > 0:
            halo_l = xl_ref[rs, pl.ds(sliver_w - pad, pad)].astype(jnp.float32)
            halo_r = xr_ref[rs, pl.ds(0, pad)].astype(jnp.float32)
            # Only the boundary tiles pay for the reflect construction.
            left = lax.cond(is_first, lambda: _reflect_left(xc, pad), lambda: halo_l)
            right = lax.cond(is_last, lambda: _reflect_right(xc, pad, tile_l), lambda: halo_r)
        else:
            left = right = None
        o_ref[rs, :] = _conv_chunk(xc, left, right, taps, tile_l, o_ref.dtype)
        return carry

    if n_chunks == 1:
        chunk_body(0, 0)
    else:
        lax.fori_loop(0, n_chunks, chunk_body, 0, unroll=True)


# ---------------------------------------------------------------------------
# Wrapper
# ---------------------------------------------------------------------------

def _pick_tile(n, unit, cap):
    """Largest multiple of `unit` <= cap that divides n (n % unit == 0 assumed)."""
    t = min(cap, (n // unit) * unit)
    while t >= unit:
        if n % t == 0:
            return t
        t -= unit
    return unit


def _gaussian_smoothing_jax(x, weight, kernel_size):
    """Pure-JAX reference (also the even-kernel_size / huge-kernel fallback)."""
    N, C, L = x.shape
    if L <= kernel_size:
        return x
    pad = kernel_size // 2
    w = jnp.asarray(weight, jnp.float32).reshape(-1, kernel_size)
    if w.shape[0] == 1:
        w = jnp.tile(w, (C, 1))
    xpad = jnp.pad(x, ((0, 0), (0, 0), (pad, pad)), mode="reflect")
    out_len = xpad.shape[-1] - kernel_size + 1
    out = jnp.zeros((N, C, out_len), jnp.float32)
    for t in range(kernel_size):
        out = out + w[None, :, t:t + 1] * xpad[:, :, t:t + out_len]
    return out.astype(x.dtype)


def gaussian_smoothing(x: jnp.ndarray, weight: jnp.ndarray, kernel_size: int) -> jnp.ndarray:
    """Forward pass of GaussianSmoothing. x: (N, C, L)."""
    N, C, L = x.shape
    if L <= kernel_size:
        return x                                     # PyTorch forward: unchanged

    if kernel_size % 2 == 0 or kernel_size > 128:
        # TODO(synk): even kernel_size changes the output length (L+1) and very large
        # kernels exceed the 128-lane halo sliver; both use the plain-JAX fallback.
        return _gaussian_smoothing_jax(x, weight, kernel_size)

    pad = kernel_size // 2
    # Every channel uses the same Gaussian taps in this module -> single (K,) vector.
    taps = jnp.asarray(weight, jnp.float32).reshape(-1, kernel_size)[0]

    rows = N * C
    x2 = x.reshape(rows, L)

    # --- Lane-dense length padding (dense vst stores on every generation) -----------
    pad_len = (-L) % 128
    if 0 < pad_len < pad:
        pad_len += 128
    if pad_len > 0:
        # Bake the true right-boundary reflect values into the first `pad` padded
        # columns so the outputs near the real boundary are exact; the rest is filler
        # whose outputs are sliced off below.
        refl_r = x2[:, L - 1 - pad:L - 1][:, ::-1]
        fill = jnp.zeros((rows, pad_len - pad), x.dtype)
        x2p = jnp.concatenate([x2, refl_r, fill], axis=-1)
    else:
        x2p = x2
    Lp = L + pad_len

    # --- Length tiling ---------------------------------------------------------------
    tile_l = _pick_tile(Lp, 128, 2048)
    n_l = Lp // tile_l

    # --- Row tiling ------------------------------------------------------------------
    if rows % 8 == 0:
        cap_r = 256
        if n_l == 1 and rows >= 16:
            # Keep >= 2 grid blocks so both v7x TensorCores get work.
            cap_r = min(cap_r, max(8, ((rows // 2) // 8) * 8))
        tile_r = _pick_tile(rows, 8, cap_r)
        r_chunk = 8
    else:
        tile_r = rows                                # full-extent fallback
        r_chunk = rows
    n_chunks = tile_r // r_chunk
    n_r = rows // tile_r

    common = dict(ksize=kernel_size, pad=pad, tile_l=tile_l,
                  r_chunk=r_chunk, n_chunks=n_chunks)
    cparams = pltpu.CompilerParams(
        dimension_semantics=("parallel", "parallel"),
        vmem_limit_bytes=32 * 1024 * 1024)

    if n_l == 1:
        # Single L-tile: no sliver inputs, each input byte read once.
        kern = functools.partial(_smooth_kernel_single, **common)
        out2 = pl.pallas_call(
            kern,
            out_shape=jax.ShapeDtypeStruct((rows, Lp), x.dtype),
            grid_spec=pl.GridSpec(
                grid=(n_r, n_l),
                in_specs=[
                    pl.BlockSpec(memory_space=pltpu.MemorySpace.SMEM),   # taps (K,)
                    pl.BlockSpec((tile_r, tile_l), lambda i, j: (i, j)),
                ],
                out_specs=pl.BlockSpec((tile_r, tile_l), lambda i, j: (i, j)),
            ),
            compiler_params=cparams,
        )(taps, x2p)
    else:
        s = tile_l // 128
        n_128 = Lp // 128
        left_map = lambda i, j: (i, jnp.maximum(j * s - 1, 0))
        right_map = lambda i, j: (i, jnp.minimum((j + 1) * s, n_128 - 1))
        kern = functools.partial(_smooth_kernel_tiled, n_l=n_l, **common)
        out2 = pl.pallas_call(
            kern,
            out_shape=jax.ShapeDtypeStruct((rows, Lp), x.dtype),
            grid_spec=pl.GridSpec(
                grid=(n_r, n_l),
                in_specs=[
                    pl.BlockSpec(memory_space=pltpu.MemorySpace.SMEM),   # taps (K,)
                    pl.BlockSpec((tile_r, tile_l), lambda i, j: (i, j)),  # centre tile
                    pl.BlockSpec((tile_r, 128), left_map),               # left halo sliver
                    pl.BlockSpec((tile_r, 128), right_map),              # right halo sliver
                ],
                out_specs=pl.BlockSpec((tile_r, tile_l), lambda i, j: (i, j)),
            ),
            compiler_params=cparams,
        )(taps, x2p, x2p, x2p)

    if pad_len > 0:
        out2 = out2[:, :L]
    return out2.reshape(N, C, L)


if __name__ == "__main__":
    channels = 4
    kernel_size = 5
    sigma = 6.0

    key = jax.random.PRNGKey(0)
    k1, k2 = jax.random.split(key)

    # Small shape consistent with the module: batch=2, channels=4, length=16.
    x = jax.random.normal(k1, (2, channels, 16), dtype=jnp.float32)
    weight = make_gaussian_weight(channels, kernel_size, sigma)
    out = jax.block_until_ready(gaussian_smoothing(x, weight, kernel_size))
    ref = _gaussian_smoothing_jax(x, weight, kernel_size)
    assert out.shape == x.shape, out.shape
    assert jnp.allclose(out, ref, atol=1e-5, rtol=1e-5), "mismatch vs reference (small)"

    # Larger shape exercising the multi-tile sliver path (interior halos, lax.cond
    # boundary reflect, unrolled row-chunk loop).
    x_big = jax.random.normal(k2, (2, 8, 4096), dtype=jnp.float32)
    w_big = make_gaussian_weight(8, kernel_size, sigma)
    out_big = jax.block_until_ready(gaussian_smoothing(x_big, w_big, kernel_size))
    ref_big = _gaussian_smoothing_jax(x_big, w_big, kernel_size)
    assert out_big.shape == x_big.shape, out_big.shape
    assert jnp.allclose(out_big, ref_big, atol=1e-5, rtol=1e-5), "mismatch vs reference (big)"

    # Non-multiple-of-128 length: lane-padded in the wrapper and sliced back.
    x_odd = jax.random.normal(k1, (2, channels, 200), dtype=jnp.float32)
    out_odd = jax.block_until_ready(gaussian_smoothing(x_odd, weight, kernel_size))
    ref_odd = _gaussian_smoothing_jax(x_odd, weight, kernel_size)
    assert out_odd.shape == x_odd.shape, out_odd.shape
    assert jnp.allclose(out_odd, ref_odd, atol=1e-5, rtol=1e-5), "mismatch vs reference (odd)"

    print("KERNEL_OK")
</pallas_src>

<mosaic_0001>
module attributes {stable_mosaic.version = 11 : i64} {
  func.func @_smooth_kernel_single(%arg0: i32, %arg1: i32, %arg2: memref<5xf32, #tpu.memory_space<smem>>, %arg3: memref<8x128xf32, #tpu.memory_space<vmem>>, %arg4: memref<8x128xf32, #tpu.memory_space<vmem>>) attributes {dimension_semantics = [#tpu.dimension_semantics<parallel>, #tpu.dimension_semantics<parallel>], iteration_bounds = array<i64: 1, 1>, scalar_prefetch = 0 : i64, scratch_operands = 0 : i64, tpu.core_type = #tpu.core_type<tc>, window_params = [{transform_indices = @transform_0, window_bounds = array<i64: 5>}, {transform_indices = @transform_1, window_bounds = array<i64: 8, 128>}, {transform_indices = @transform_2, window_bounds = array<i64: 8, 128>}]} {
    %c0 = arith.constant 0 : index
    %0 = memref.load %arg2[%c0] : memref<5xf32, #tpu.memory_space<smem>>
    %c1 = arith.constant 1 : index
    %1 = memref.load %arg2[%c1] : memref<5xf32, #tpu.memory_space<smem>>
    %c2 = arith.constant 2 : index
    %2 = memref.load %arg2[%c2] : memref<5xf32, #tpu.memory_space<smem>>
    %c3 = arith.constant 3 : index
    %3 = memref.load %arg2[%c3] : memref<5xf32, #tpu.memory_space<smem>>
    %c4 = arith.constant 4 : index
    %4 = memref.load %arg2[%c4] : memref<5xf32, #tpu.memory_space<smem>>
    %c0_0 = arith.constant 0 : index
    %c0_1 = arith.constant 0 : index
    %5 = vector.load %arg3[%c0_0, %c0_1] : memref<8x128xf32, #tpu.memory_space<vmem>>, vector<8x128xf32>
    %6 = vector.extract_strided_slice %5 {offsets = [0, 2], sizes = [8, 1], strides = [1, 1]} : vector<8x128xf32> to vector<8x1xf32>
    %7 = vector.extract_strided_slice %5 {offsets = [0, 1], sizes = [8, 1], strides = [1, 1]} : vector<8x128xf32> to vector<8x1xf32>
    %8 = tpu.concatenate %6, %7 in 1 : vector<8x1xf32>, vector<8x1xf32> -> vector<8x2xf32>
    %9 = vector.extract_strided_slice %5 {offsets = [0, 126], sizes = [8, 1], strides = [1, 1]} : vector<8x128xf32> to vector<8x1xf32>
    %10 = vector.extract_strided_slice %5 {offsets = [0, 125], sizes = [8, 1], strides = [1, 1]} : vector<8x128xf32> to vector<8x1xf32>
    %11 = tpu.concatenate %9, %10 in 1 : vector<8x1xf32>, vector<8x1xf32> -> vector<8x2xf32>
    %12 = tpu.concatenate %8, %5, %11 in 1 : vector<8x2xf32>, vector<8x128xf32>, vector<8x2xf32> -> vector<8x132xf32>
    %13 = vector.extract_strided_slice %12 {offsets = [0, 0], sizes = [8, 128], strides = [1, 1]} : vector<8x132xf32> to vector<8x128xf32>
    %14 = vector.broadcast %0 : f32 to vector<8x128xf32>
    %15 = arith.mulf %14, %13 : vector<8x128xf32>
    %16 = vector.extract_strided_slice %12 {offsets = [0, 1], sizes = [8, 128], strides = [1, 1]} : vector<8x132xf32> to vector<8x128xf32>
    %17 = vector.broadcast %1 : f32 to vector<8x128xf32>
    %18 = arith.mulf %17, %16 : vector<8x128xf32>
    %19 = arith.addf %15, %18 : vector<8x128xf32>
    %20 = vector.extract_strided_slice %12 {offsets = [0, 2], sizes = [8, 128], strides = [1, 1]} : vector<8x132xf32> to vector<8x128xf32>
    %21 = vector.broadcast %2 : f32 to vector<8x128xf32>
    %22 = arith.mulf %21, %20 : vector<8x128xf32>
    %23 = arith.addf %19, %22 : vector<8x128xf32>
    %24 = vector.extract_strided_slice %12 {offsets = [0, 3], sizes = [8, 128], strides = [1, 1]} : vector<8x132xf32> to vector<8x128xf32>
    %25 = vector.broadcast %3 : f32 to vector<8x128xf32>
    %26 = arith.mulf %25, %24 : vector<8x128xf32>
    %27 = arith.addf %23, %26 : vector<8x128xf32>
    %28 = vector.extract_strided_slice %12 {offsets = [0, 4], sizes = [8, 128], strides = [1, 1]} : vector<8x132xf32> to vector<8x128xf32>
    %29 = vector.broadcast %4 : f32 to vector<8x128xf32>
    %30 = arith.mulf %29, %28 : vector<8x128xf32>
    %31 = arith.addf %27, %30 : vector<8x128xf32>
    %c0_2 = arith.constant 0 : index
    %c0_3 = arith.constant 0 : index
    %32 = vector.load %arg4[%c0_2, %c0_3] : memref<8x128xf32, #tpu.memory_space<vmem>>, vector<8x128xf32>
    tpu.vector_store %arg4[%c0_2, %c0_3], %31 {strides = array<i32>} : memref<8x128xf32, #tpu.memory_space<vmem>>, vector<8x128xf32>,
    return
  }
  func.func @transform_0(%arg0: i32, %arg1: i32) -> i32 {
    %c0_i32 = arith.constant 0 : i32
    %c0_i32_0 = arith.constant 0 : i32
    return %c0_i32 : i32
  }
  func.func @transform_1(%arg0: i32, %arg1: i32) -> (i32, i32) {
    %c0_i32 = arith.constant 0 : i32
    return %arg0, %arg1 : i32, i32
  }
  func.func @transform_2(%arg0: i32, %arg1: i32) -> (i32, i32) {
    %c0_i32 = arith.constant 0 : i32
    return %arg0, %arg1 : i32, i32
  }
}

</mosaic_0001>

<llo_original>
// kernel: tpu_custom_call.1
$region0: #{tpu_custom_call.1}
  #allocation0 [shape = 'u32[]', space=smem, size = 0x4, offset = 0x4, fixed_abs, tag = 'smem constant byte address 0x4 - core index']
  #allocation1 [shape = 'u32[144,128]{1,0:T(1,128)}', space=vmem, size = 0x12000, scoped, tag = 'internal scratch']
  %s0 = inlined_call_operand.hbm [shape: f32[5], index: 0, kind: input, shape index: {}]
  %s1 = inlined_call_operand.hbm [shape: f32[8,128], index: 1, kind: input, shape index: {}]
  %s2 = inlined_call_operand.hbm [shape: f32[8,128], index: 2, kind: output, shape index: {}]
  %s3 = sld [smem:[#allocation0]]
  $region26: #{tpu_custom_call.1} parent=0
    _
  %s5 = ssub.s32 1, %s3
  %s6 = scalar_select 0, %s5, %s3
  $region1: #{tpu_custom_call.1} parent=0
    #allocation2 [shape = 'u8[512]{0}', space=smem, size = 0x200, scoped, tag = 'input window, operand 0, single buffered']
    #allocation3 [shape = 's32[1]{0}', space=sflag, size = 0x4, scoped, tag = 'scoped memory for tpu_custom_call.1']
    #allocation4 [shape = 's32[1]{0}', space=sflag, size = 0x4, scoped, tag = 'scoped memory for tpu_custom_call.1']
    #allocation5 [shape = 's32[1]{0}', space=sflag, size = 0x4, scoped, tag = 'scoped memory for tpu_custom_call.1']
    #allocation6 [shape = 'u8[4096]{0}', space=vmem, size = 0x1000, scoped, tag = 'input window, operand 1, single buffered']
    #allocation7 [shape = 'u8[4096]{0}', space=vmem, size = 0x1000, scoped, tag = 'output window, operand 0, single buffered']
    %7 = vsyncpa [#allocation5], 0
    %8 = vsyncpa [#allocation3], 0
    %9 = vsyncpa [#allocation4], 0
    // Predicated region
    $region2: #{tpu_custom_call.1} parent=1 // pred_check
      _
    $region3: #{tpu_custom_call.1} parent=1 // pred_check_branch
      %11 = sbr.rel (0) target = $region5
    $region4: #{tpu_custom_call.1} parent=1 // pred_region
      %s13 = ssub.s32 16, 16
      %14 = vsyncadd [#allocation5], %s13
      %17 = dma.hbm_to_smem %s0, 16, [#allocation2], [#allocation5]
    $region5: #{tpu_custom_call.1} parent=1 // pred_fallthru
      _
    // Predicated region
    $region6: #{tpu_custom_call.1} parent=1 // pred_check
      _
    $region7: #{tpu_custom_call.1} parent=1 // pred_check_branch
      %19 = sbr.rel (0) target = $region9
    $region8: #{tpu_custom_call.1} parent=1 // pred_region
      %s21 = ssub.s32 128, 128
      %22 = vsyncadd [#allocation3], %s21
      %s24 = sshll.u32 [#allocation6], 4
      %s25 = int_to_ptr.vmem [resolvable:$true] %s24
      %27 = dma.hbm_to_vmem [thread:$0]  %s1, 128, %s25, [#allocation3]
    $region9: #{tpu_custom_call.1} parent=1 // pred_fallthru
      _
    // Predicated region
    $region10: #{tpu_custom_call.1} parent=1 // pred_check
      _
    $region11: #{tpu_custom_call.1} parent=1 // pred_check_branch
      %29 = sbr.rel (0) target = $region13
    $region12: #{tpu_custom_call.1} parent=1 // pred_region
      %30 = dma.done [#allocation5], 16
    $region13: #{tpu_custom_call.1} parent=1 // pred_fallthru
      _
    // Predicated region
    $region14: #{tpu_custom_call.1} parent=1 // pred_check
      _
    $region15: #{tpu_custom_call.1} parent=1 // pred_check_branch
      %32 = sbr.rel (0) target = $region17
    $region16: #{tpu_custom_call.1} parent=1 // pred_region
      %33 = dma.done [#allocation3], 128
    $region17: #{tpu_custom_call.1} parent=1 // pred_fallthru
      _
    %34 = sfence
    %s35 = sld [smem:[#allocation2]]
    %s36 = sld [smem:[#allocation2 + $0x1]]
    %s37 = sld [smem:[#allocation2 + $0x2]]
    %s38 = sld [smem:[#allocation2 + $0x3]]
    %s39 = sld [smem:[#allocation2 + $0x4]]
    %v40 = vld [vmem:[#allocation6] sm:$0xff]
    %42 = vrot.lane.b32.xlu0 %v40, 126
    %v43 = vpop.permute.xlu0 %42
    %vm45 = vcmask 7168
    %v46 = vsel %vm45, %v43, %v40
    %47 = vrot.lane.b32.xlu0 %v40, 2
    %v48 = vpop.permute.xlu0 %47
    %50 = vrot.lane.b32.xlu0 %v40, 4
    %v51 = vpop.permute.xlu0 %50
    %v53 = vsel %vm45, %v48, %v51
    %55 = vrot.lane.b32.xlu0 %v53, 2
    %v56 = vpop.permute.xlu0 %55
    %vm58 = vcmask 15360
    %v59 = vsel %vm58, %v46, %v48
    %v60 = vsel %vm58, %v48, %v56
    %v61 = vstv %s35
    %v62 = vmul.f32 %v61, %v59
    %v63 = vstv %s36
    %v64 = vmul.f32 %v63, %v59
    %v65 = vmul.f32 %v63, %v60
    %68 = vrot.lane.b32.xlu0 %v64, 127
    %v69 = vpop.permute.xlu0 %68
    %70 = vrot.lane.b32.xlu0 %v65, 127
    %v71 = vpop.permute.xlu0 %70
    %vm72 = vcmask 1039360
    %v73 = vsel %vm72, %v69, %v71
    %v75 = vadd.f32 %v62, %v73
    %v76 = vstv %s37
    %v77 = vmul.f32 %v76, %v59
    %v78 = vmul.f32 %v76, %v60
    %81 = vrot.lane.b32.xlu0 %v77, 126
    %v82 = vpop.permute.xlu0 %81
    %83 = vrot.lane.b32.xlu0 %v78, 126
    %v84 = vpop.permute.xlu0 %83
    %vm85 = vcmask 1031168
    %v86 = vsel %vm85, %v82, %v84
    %v88 = vadd.f32 %v75, %v86
    %v89 = vstv %s38
    %v90 = vmul.f32 %v89, %v59
    %v91 = vmul.f32 %v89, %v60
    %94 = vrot.lane.b32.xlu0 %v90, 125
    %v95 = vpop.permute.xlu0 %94
    %96 = vrot.lane.b32.xlu0 %v91, 125
    %v97 = vpop.permute.xlu0 %96
    %vm98 = vcmask 1022976
    %v99 = vsel %vm98, %v95, %v97
    %v101 = vadd.f32 %v88, %v99
    %v102 = vstv %s39
    %v103 = vmul.f32 %v102, %v59
    %v104 = vmul.f32 %v102, %v60
    %107 = vrot.lane.b32.xlu0 %v103, 124
    %v108 = vpop.permute.xlu0 %107
    %109 = vrot.lane.b32.xlu0 %v104, 124
    %v110 = vpop.permute.xlu0 %109
    %vm111 = vcmask 1014784
    %v112 = vsel %vm111, %v108, %v110
    %v114 = vadd.f32 %v101, %v112
    %115 = vst [vmem:[#allocation7] sm:$0xff] %v114
    // Predicated region
    $region18: #{tpu_custom_call.1} parent=1 // pred_check
      _
    $region19: #{tpu_custom_call.1} parent=1 // pred_check_branch
      %117 = sbr.rel (0) target = $region21
    $region20: #{tpu_custom_call.1} parent=1 // pred_region
      %s119 = ssub.s32 128, 128
      %120 = vsyncadd [#allocation4], %s119
      %s122 = sshll.u32 [#allocation7], 4
      %s123 = int_to_ptr.vmem [resolvable:$true] %s122
      %125 = dma.vmem_to_hbm [thread:$0]  %s123, 128, %s2, [#allocation4]
    $region21: #{tpu_custom_call.1} parent=1 // pred_fallthru
      _
    // Predicated region
    $region22: #{tpu_custom_call.1} parent=1 // pred_check
      _
    $region23: #{tpu_custom_call.1} parent=1 // pred_check_branch
      %127 = sbr.rel (0) target = $region25
    $region24: #{tpu_custom_call.1} parent=1 // pred_region
      %128 = dma.done [#allocation4], 128
    $region25: #{tpu_custom_call.1} parent=1 // pred_fallthru
      _
    %129 = vsyncpa [#allocation3], 1
    %130 = vsyncpa [#allocation4], 1
    %131 = vsyncpa [#allocation5], 1

</llo_original>
